<compile_context>
chip_gen: v7x
topology: tpu7x:2x2x1
jax: 0.10.0
libtpu: 0.0.40
codegen_flags: <defaults>
</compile_context>

<pallas_src>
import functools

import jax
import jax.numpy as jnp
from jax.experimental import pallas as pl
from jax.experimental.pallas import tpu as pltpu


def _round_up(v, m):
    return (v + m - 1) // m * m


def _vmem_capacity_bytes():
    try:
        return int(pltpu.get_tpu_info().vmem_capacity_bytes)
    except Exception:
        return 64 * 2**20  # conservative (v7x-sized) default


def _moving_avg_kernel(x_ref, out_ref, slab_ref, *, kernel_size, pad, stride, front):
    """One (batch-tile, channel-tile) block.

    x_ref    : (TB, L, TC)      input block
    out_ref  : (TB, n_out, TC)  pooled output block (already strided)
    slab_ref : (S, TC) f32      scratch: [filler | front halo | x | end halo]
    """
    TB, L, TC = x_ref.shape
    n_out = out_ref.shape[1]
    S = slab_ref.shape[0]
    K = kernel_size
    Lp = L + 2 * pad
    inv_k = 1.0 / K
    start0 = front - pad  # slab row holding the first window's first tap

    # Direct taps unless K is very large: each scan step costs ~2 loads + 1
    # store + 1 add over the whole slab vs ~1 load + 1 add per tap.
    scan_steps = max(1, (Lp - 1).bit_length())
    use_prefix = (K - 1) > 4 * scan_steps and n_out > 1

    def win(row):
        # One tap for every output position; strided when stride > 1.
        if stride > 1:
            return slab_ref[pl.ds(row, n_out, stride=stride), :]
        return slab_ref[pl.ds(row, n_out), :]

    for b in range(TB):  # TB is static and small -> unrolled
        # ---- build the edge-replicated slab in VMEM (f32) --------------------
        if use_prefix and start0 > 0:
            # Leading filler participates in the scan; keep it exactly zero.
            slab_ref[0:start0, :] = jnp.zeros((start0, TC), jnp.float32)
        if pad > 0:
            x0 = x_ref[b, 0:1, :].astype(jnp.float32)
            slab_ref[start0:front, :] = jnp.broadcast_to(x0, (pad, TC))
        slab_ref[front:front + L, :] = x_ref[b].astype(jnp.float32)
        tail = S - (front + L)
        if tail > 0:
            xe = x_ref[b, L - 1:L, :].astype(jnp.float32)
            slab_ref[front + L:S, :] = jnp.broadcast_to(xe, (tail, TC))

        # ---- window sums ------------------------------------------------------
        if use_prefix:
            # In-place Hillis-Steele inclusive scan.  Both operands are loaded
            # as values before the overlapping store, so the update is safe.
            off = 1
            while off < S:
                lo = slab_ref[0:S - off, :]
                hi = slab_ref[off:S, :]
                slab_ref[off:S, :] = hi + lo
                off *= 2
            window = win(start0 + K - 1) - win(start0 - 1)
        else:
            acc = win(start0)  # tap 0 initializes the accumulator
            for j in range(1, K):
                acc = acc + win(start0 + j)
            window = acc

        out_ref[b] = (window * inv_k).astype(out_ref.dtype)


def moving_average(x, kernel_size, stride=1, out_dtype=None):
    """Pallas TPU equivalent of MovingAverage.forward. x: (B, L, C)."""
    assert x.ndim == 3, "expected (batch, length, channels)"
    assert kernel_size >= 1 and stride >= 1
    B, L, C = x.shape
    out_dtype = x.dtype if out_dtype is None else out_dtype

    pad = (kernel_size - 1) // 2
    Lp = L + 2 * pad
    assert Lp >= kernel_size, "sequence too short for kernel_size"
    n_out = (Lp - kernel_size) // stride + 1  # AvgPool1d output length

    # 8-row-aligned slab layout: the main x copy starts on a sublane boundary
    # and a row exists before the first tap (needed by the prefix-sum path).
    front = _round_up(pad + 1, 8)
    S = _round_up(front + L + pad, 8)

    LANE = 128
    in_elt = jnp.dtype(x.dtype).itemsize
    out_elt = jnp.dtype(out_dtype).itemsize
    cap = _vmem_capacity_bytes()
    budget = cap // 4  # per-grid-step working-set target

    def per_step_vmem(tb, tc):
        return (2 * tb * L * tc * in_elt          # double-buffered input block
                + 2 * tb * n_out * tc * out_elt   # double-buffered output block
                + S * tc * 4                      # f32 scratch slab
                + 4 * n_out * tc * 4)             # live f32 value temporaries

    # ---- channel tiling (avoid pad/unpad HBM round trips) --------------------
    if C % LANE == 0:
        x_in, C_eff = x, C
        cands = sorted({c for c in (C, 1024, 512, 256, LANE) if C % c == 0},
                       reverse=True)
        TC = cands[-1]
        for c in cands:
            if per_step_vmem(1, c) <= budget:
                TC = c
                break
    elif per_step_vmem(1, C) <= budget:
        # Block last dim == full array dim is legal, so no lane padding needed.
        x_in, C_eff, TC = x, C, C
    else:
        # Huge non-128-multiple C: fall back to lane padding + tiling.
        C_eff = _round_up(C, LANE)
        x_in = jnp.pad(x, ((0, 0), (0, 0), (0, C_eff - C)))
        TC = LANE
        for c in (512, 256):
            if C_eff % c == 0 and per_step_vmem(1, c) <= budget:
                TC = c
                break

    n_c_blocks = C_eff // TC

    # ---- fold batch rows per step to amortize per-step pipeline overhead -----
    per_row_hbm = L * TC * in_elt + n_out * TC * out_elt
    target_hbm = 2 * 2**20
    TB = 1
    for cand in range(2, B + 1):
        if B % cand:
            continue
        if per_step_vmem(cand, TC) > budget:
            break
        if (B // cand) * n_c_blocks < 2 <= B * n_c_blocks:
            break  # keep >= 2 grid steps so both TCs / megacore stay busy
        TB = cand
        if cand * per_row_hbm >= target_hbm:
            break

    per_step = per_step_vmem(TB, TC)
    vmem_limit = int(min(cap * 5 // 8, max(32 * 2**20, 3 * per_step)))

    kernel = functools.partial(_moving_avg_kernel, kernel_size=kernel_size,
                               pad=pad, stride=stride, front=front)

    out = pl.pallas_call(
        kernel,
        out_shape=jax.ShapeDtypeStruct((B, n_out, C_eff), out_dtype),
        grid_spec=pltpu.PrefetchScalarGridSpec(
            num_scalar_prefetch=0,
            grid=(B // TB, n_c_blocks),
            in_specs=[pl.BlockSpec((TB, L, TC), lambda b, c: (b, 0, c))],
            out_specs=pl.BlockSpec((TB, n_out, TC), lambda b, c: (b, 0, c)),
            scratch_shapes=[pltpu.VMEM((S, TC), jnp.float32)],
        ),
        compiler_params=pltpu.CompilerParams(
            dimension_semantics=("parallel", "parallel"),
            vmem_limit_bytes=vmem_limit,
        ),
    )(x_in)

    if C_eff != C:
        out = out[:, :, :C]
    return out


def _reference(x, kernel_size, stride=1):
    """Pure-JAX mirror of the PyTorch module (for checking)."""
    pad = (kernel_size - 1) // 2
    front = jnp.repeat(x[:, 0:1, :], pad, axis=1)
    end = jnp.repeat(x[:, -1:, :], pad, axis=1)
    xpad = jnp.concatenate([front, x, end], axis=1)
    Lp = xpad.shape[1]
    n_out = (Lp - kernel_size) // stride + 1
    cols = []
    for t in range(n_out):
        s = t * stride
        cols.append(jnp.mean(xpad[:, s:s + kernel_size, :], axis=1))
    return jnp.stack(cols, axis=1)


if __name__ == "__main__":
    key = jax.random.PRNGKey(0)
    cases = [
        dict(B=2, L=8,   C=32,  K=5,   stride=1, tol=1e-5),  # small C, full-C block, direct taps
        dict(B=4, L=32,  C=256, K=25,  stride=1, tol=1e-5),  # Autoformer default K, batch folding
        dict(B=2, L=16,  C=32,  K=5,   stride=2, tol=1e-5),  # strided pooling computed in-kernel
        dict(B=2, L=24,  C=160, K=7,   stride=1, tol=1e-5),  # C>128, not lane-multiple -> full-C block
        dict(B=2, L=128, C=128, K=101, stride=1, tol=1e-4),  # very large K -> prefix-sum path
    ]
    for i, cfg in enumerate(cases):
        key, sub = jax.random.split(key)
        x = jax.random.normal(sub, (cfg["B"], cfg["L"], cfg["C"]), dtype=jnp.float32)
        out = moving_average(x, cfg["K"], cfg["stride"])
        jax.block_until_ready(out)
        ref = _reference(x, cfg["K"], cfg["stride"])
        assert out.shape == ref.shape, (i, out.shape, ref.shape)
        assert jnp.allclose(out, ref, atol=cfg["tol"], rtol=cfg["tol"]), f"case {i} mismatch"
    print("KERNEL_OK")
</pallas_src>

<mosaic_0001>
module attributes {stable_mosaic.version = 11 : i64} {
  func.func @_moving_avg_kernel(%arg0: i32, %arg1: i32, %arg2: memref<1x8x32xf32, #tpu.memory_space<vmem>>, %arg3: memref<1x8x32xf32, #tpu.memory_space<vmem>>, %arg4: memref<24x32xf32, #tpu.memory_space<vmem>>) attributes {dimension_semantics = [#tpu.dimension_semantics<parallel>, #tpu.dimension_semantics<parallel>], iteration_bounds = array<i64: 2, 1>, scalar_prefetch = 0 : i64, scratch_operands = 1 : i64, tpu.core_type = #tpu.core_type<tc>, window_params = [{transform_indices = @transform_0, window_bounds = array<i64: 1, 8, 32>}, {transform_indices = @transform_1, window_bounds = array<i64: 1, 8, 32>}]} {
    %c0 = arith.constant 0 : index
    %c0_0 = arith.constant 0 : index
    %c0_1 = arith.constant 0 : index
    %0 = vector.load %arg2[%c0, %c0_0, %c0_1] : memref<1x8x32xf32, #tpu.memory_space<vmem>>, vector<1x1x32xf32>
    %1 = vector.shape_cast %0 : vector<1x1x32xf32> to vector<1x32xf32>
    %2 = vector.shape_cast %1 : vector<1x32xf32> to vector<1x32xf32>
    %3 = vector.broadcast %2 : vector<1x32xf32> to vector<2x32xf32>
    %c6 = arith.constant 6 : index
    %c0_2 = arith.constant 0 : index
    %4 = vector.load %arg4[%c6, %c0_2] : memref<24x32xf32, #tpu.memory_space<vmem>>, vector<2x32xf32>
    tpu.vector_store %arg4[%c6, %c0_2], %3 {strides = array<i32>} : memref<24x32xf32, #tpu.memory_space<vmem>>, vector<2x32xf32>,
    %c0_3 = arith.constant 0 : index
    %c0_4 = arith.constant 0 : index
    %c0_5 = arith.constant 0 : index
    %5 = vector.load %arg2[%c0_3, %c0_4, %c0_5] : memref<1x8x32xf32, #tpu.memory_space<vmem>>, vector<1x8x32xf32>
    %6 = vector.shape_cast %5 : vector<1x8x32xf32> to vector<8x32xf32>
    %c8 = arith.constant 8 : index
    %c0_6 = arith.constant 0 : index
    %7 = vector.load %arg4[%c8, %c0_6] : memref<24x32xf32, #tpu.memory_space<vmem>>, vector<8x32xf32>
    tpu.vector_store %arg4[%c8, %c0_6], %6 {strides = array<i32>} : memref<24x32xf32, #tpu.memory_space<vmem>>, vector<8x32xf32>,
    %c0_7 = arith.constant 0 : index
    %c7 = arith.constant 7 : index
    %c0_8 = arith.constant 0 : index
    %8 = vector.load %arg2[%c0_7, %c7, %c0_8] : memref<1x8x32xf32, #tpu.memory_space<vmem>>, vector<1x1x32xf32>
    %9 = vector.shape_cast %8 : vector<1x1x32xf32> to vector<1x32xf32>
    %10 = vector.shape_cast %9 : vector<1x32xf32> to vector<1x32xf32>
    %11 = vector.broadcast %10 : vector<1x32xf32> to vector<8x32xf32>
    %c16 = arith.constant 16 : index
    %c0_9 = arith.constant 0 : index
    %12 = vector.load %arg4[%c16, %c0_9] : memref<24x32xf32, #tpu.memory_space<vmem>>, vector<8x32xf32>
    tpu.vector_store %arg4[%c16, %c0_9], %11 {strides = array<i32>} : memref<24x32xf32, #tpu.memory_space<vmem>>, vector<8x32xf32>,
    %c6_10 = arith.constant 6 : index
    %c0_11 = arith.constant 0 : index
    %13 = vector.load %arg4[%c6_10, %c0_11] : memref<24x32xf32, #tpu.memory_space<vmem>>, vector<8x32xf32>
    %c7_12 = arith.constant 7 : index
    %c0_13 = arith.constant 0 : index
    %14 = vector.load %arg4[%c7_12, %c0_13] : memref<24x32xf32, #tpu.memory_space<vmem>>, vector<8x32xf32>
    %15 = arith.addf %13, %14 : vector<8x32xf32>
    %c8_14 = arith.constant 8 : index
    %c0_15 = arith.constant 0 : index
    %16 = vector.load %arg4[%c8_14, %c0_15] : memref<24x32xf32, #tpu.memory_space<vmem>>, vector<8x32xf32>
    %17 = arith.addf %15, %16 : vector<8x32xf32>
    %c9 = arith.constant 9 : index
    %c0_16 = arith.constant 0 : index
    %18 = vector.load %arg4[%c9, %c0_16] : memref<24x32xf32, #tpu.memory_space<vmem>>, vector<8x32xf32>
    %19 = arith.addf %17, %18 : vector<8x32xf32>
    %c10 = arith.constant 10 : index
    %c0_17 = arith.constant 0 : index
    %20 = vector.load %arg4[%c10, %c0_17] : memref<24x32xf32, #tpu.memory_space<vmem>>, vector<8x32xf32>
    %21 = arith.addf %19, %20 : vector<8x32xf32>
    %cst = arith.constant 2.000000e-01 : f32
    %22 = vector.broadcast %cst : f32 to vector<8x32xf32>
    %23 = arith.mulf %21, %22 : vector<8x32xf32>
    %c0_18 = arith.constant 0 : index
    %c0_19 = arith.constant 0 : index
    %c0_20 = arith.constant 0 : index
    %24 = vector.load %arg3[%c0_18, %c0_19, %c0_20] : memref<1x8x32xf32, #tpu.memory_space<vmem>>, vector<1x8x32xf32>
    %25 = vector.shape_cast %24 : vector<1x8x32xf32> to vector<8x32xf32>
    %26 = vector.shape_cast %23 : vector<8x32xf32> to vector<1x8x32xf32>
    tpu.vector_store %arg3[%c0_18, %c0_19, %c0_20], %26 {strides = array<i32>} : memref<1x8x32xf32, #tpu.memory_space<vmem>>, vector<1x8x32xf32>,
    return
  }
  func.func @transform_0(%arg0: i32, %arg1: i32) -> (i32, i32, i32) {
    %c0_i32 = arith.constant 0 : i32
    %c0_i32_0 = arith.constant 0 : i32
    return %arg0, %c0_i32, %arg1 : i32, i32, i32
  }
  func.func @transform_1(%arg0: i32, %arg1: i32) -> (i32, i32, i32) {
    %c0_i32 = arith.constant 0 : i32
    %c0_i32_0 = arith.constant 0 : i32
    return %arg0, %c0_i32, %arg1 : i32, i32, i32
  }
}

</mosaic_0001>

<llo_original>
// kernel: tpu_custom_call.1
$region0: #{tpu_custom_call.1}
  #allocation0 [shape = 'u32[]', space=smem, size = 0x4, offset = 0x4, fixed_abs, tag = 'smem constant byte address 0x4 - core index']
  #allocation1 [shape = 'u32[144,128]{1,0:T(1,128)}', space=vmem, size = 0x12000, scoped, tag = 'internal scratch']
  #allocation2 [shape = 'f32[24,32]{1,0:T(8,128)}', space=vmem, size = 0x3000, scoped, tag = 'scratch operand']
  %s0 = inlined_call_operand.hbm [shape: f32[2,8,32], index: 0, kind: input, shape index: {}]
  %s1 = inlined_call_operand.hbm [shape: f32[2,8,32], index: 1, kind: output, shape index: {}]
  %s2 = sld [smem:[#allocation0]]
  $region41: #{tpu_custom_call.1} parent=0
    _
  %s4 = ssub.s32 1, %s2
  %s5 = scalar_select 0, %s4, %s2
  $region1: #{tpu_custom_call.1} parent=0
    #allocation3 [shape = 'u8[8192]{0}', space=vmem, size = 0x2000, scoped, tag = 'input window, operand 0']
    #allocation4 [shape = 's32[2]{0}', space=sflag, size = 0x8, scoped, tag = 'scoped memory for tpu_custom_call.1']
    #allocation5 [shape = 's32[2]{0}', space=sflag, size = 0x8, scoped, tag = 'scoped memory for tpu_custom_call.1']
    #allocation6 [shape = 'u8[8192]{0}', space=vmem, size = 0x2000, scoped, tag = 'output window, operand 0']
    %6 = vsyncpa [#allocation4], 0
    %s7 = scalar_lea.sflag [#allocation4], 1
    %8 = vsyncpa %s7, 0
    %9 = vsyncpa [#allocation5], 0
    %s10 = scalar_lea.sflag [#allocation5], 1
    %11 = vsyncpa %s10, 0
    loop: start=0, step=1, limit=4
    $region2: #{tpu_custom_call.1} parent=1 // loop_pre_header
      _
    $region3: #{tpu_custom_call.1} parent=1 // loop_header
      %s13 = sphi 0, %s17
      %p14 = scmp.ge.s32.totalorder %s13, 4
      %s20 = sphi 0, %s32
      %s21 = sphi 0, %s28
      %s22 = sphi 0, %s20
      %s23 = sphi 0, %s21
      %s24 = sphi 0, %s22
      %s25 = sphi 0, %s23
      %s37 = sphi 0, %s39
      %s40 = sphi 0, %s37
      %s41 = sphi 0, %s40
      %s57 = sphi 0, %s41
      %s65 = sphi 0, %s67
      %s68 = sphi 0, %s65
      %s69 = sphi 0, %s68
      %s85 = sphi 0, %s69
    $region4: #{tpu_custom_call.1} parent=1 // loop_header_branch
      %16 = sbr.rel (%p14) target = $region8
    $region5: #{tpu_custom_call.1} parent=1 // loop_body
      %s18 = ssub.s32 %s13, 1
      %s19 = ssub.s32 %s13, 2
      %s26 = sadd.s32 1, %s21
      %p27 = scmp.ge.s32.totalorder %s26, 1
      %s28 = scalar_select %p27, 0, %s26
      %s29 = sadd.s32 1, %s20
      %s30 = scalar_select %p27, %s29, %s20
      %p31 = scmp.ge.s32.totalorder %s30, 2
      %s32 = scalar_select %p31, 0, %s30
      %s33 = ssub.s32 %s20, %s32
      %s34 = ssub.s32 %s21, %s28
      %s35 = sor.u32 %s33, %s34
      %p36 = scmp.eq.s32.totalorder %s35, 0
      %s38 = sadd.s32 %s37, 1
      %s39 = scalar_select %p36, %s37, %s38
      %p42 = pneg %p36
      %p43 = scmp.eq.s32.totalorder %s13, 1
      %p44 = por %p42, %p43
      %p45 = scmp.ne.s32.totalorder %s37, %s40
      %p46 = scmp.eq.s32.totalorder %s13, 0
      %p47 = por %p45, %p46
      %p48 = scmp.ne.s32.totalorder %s37, %s40
      %p49 = scmp.eq.s32.totalorder %s18, 1
      %p50 = por %p48, %p49
      %p51 = scmp.ne.s32.totalorder %s40, %s41
      %p52 = scmp.eq.s32.totalorder %s18, 0
      %p53 = por %p51, %p52
      %p54 = scmp.ne.s32.totalorder %s40, %s41
      %p55 = scmp.eq.s32.totalorder %s19, 1
      %p56 = por %p54, %p55
      %p58 = scmp.ne.s32.totalorder %s41, %s57
      %p59 = scmp.eq.s32.totalorder %s19, 0
      %p60 = por %p58, %p59
      %s61 = ssub.s32 %s20, %s32
      %s62 = ssub.s32 %s21, %s28
      %s63 = sor.u32 %s61, %s62
      %p64 = scmp.eq.s32.totalorder %s63, 0
      %s66 = sadd.s32 %s65, 1
      %s67 = scalar_select %p64, %s65, %s66
      %p70 = pneg %p64
      %p71 = scmp.eq.s32.totalorder %s13, 1
      %p72 = por %p70, %p71
      %p73 = scmp.ne.s32.totalorder %s65, %s68
      %p74 = scmp.eq.s32.totalorder %s13, 0
      %p75 = por %p73, %p74
      %p76 = scmp.ne.s32.totalorder %s65, %s68
      %p77 = scmp.eq.s32.totalorder %s18, 1
      %p78 = por %p76, %p77
      %p79 = scmp.ne.s32.totalorder %s68, %s69
      %p80 = scmp.eq.s32.totalorder %s18, 0
      %p81 = por %p79, %p80
      %p82 = scmp.ne.s32.totalorder %s68, %s69
      %p83 = scmp.eq.s32.totalorder %s19, 1
      %p84 = por %p82, %p83
      %p86 = scmp.ne.s32.totalorder %s69, %s85
      %p87 = scmp.eq.s32.totalorder %s19, 0
      %p88 = por %p86, %p87
      %p89 = scmp.le.s32.totalorder 1, %s13
      %p90 = scmp.lt.s32.totalorder %s13, 3
      %p91 = pnand %p89, %p90
      %p92 = pneg %p91
      // Predicated region
      $region9: #{tpu_custom_call.1} parent=5 // pred_check
        _
      $region10: #{tpu_custom_call.1} parent=5 // pred_check_branch
        %94 = sbr.rel (%p91) target = $region12
      $region11: #{tpu_custom_call.1} parent=5 // pred_region
        %s95 = ssub.s32 %s13, 1
      $region12: #{tpu_custom_call.1} parent=5 // pred_fallthru
        _
      %p96 = scmp.lt.s32.totalorder %s13, 2
      // Predicated region
      $region13: #{tpu_custom_call.1} parent=5 // pred_check
        %p97 = pneg %p96
      $region14: #{tpu_custom_call.1} parent=5 // pred_check_branch
        %99 = sbr.rel (%p97) target = $region16
      $region15: #{tpu_custom_call.1} parent=5 // pred_region
        // Predicated region
        $region17: #{tpu_custom_call.1} parent=15 // pred_check
          %p100 = pneg %p47
        $region18: #{tpu_custom_call.1} parent=15 // pred_check_branch
          %102 = sbr.rel (%p100) target = $region20
        $region19: #{tpu_custom_call.1} parent=15 // pred_region
          %s103 = sand.u32 %s37, 1
          %s104 = scalar_lea.sflag [#allocation4], %s103
          %s105 = sand.u32 %s37, 1
          %s106 = smul.addr %s105, 8
          %s107 = scalar_lea.vmem [#allocation3], %s106
          %s109 = ssub.s32 128, 128
          %110 = vsyncadd %s104, %s109
          %s111 = sadd.s32 %s21, %s20
          %s112 = smul.addr %s111, 128
          %s113 = scalar_lea.hbm %s0, %s112
          %s115 = sshll.u32 %s107, 4
          %s116 = int_to_ptr.vmem [resolvable:$true] %s115
          %118 = dma.hbm_to_vmem [thread:$0]  %s113, 128, %s116, %s104
        $region20: #{tpu_custom_call.1} parent=15 // pred_fallthru
          _
      $region16: #{tpu_custom_call.1} parent=5 // pred_fallthru
        _
      %p119 = scmp.le.s32.totalorder 1, %s13
      %p120 = scmp.lt.s32.totalorder %s13, 3
      %p121 = pnand %p119, %p120
      %p122 = pneg %p121
      // Predicated region
      $region21: #{tpu_custom_call.1} parent=5 // pred_check
        _
      $region22: #{tpu_custom_call.1} parent=5 // pred_check_branch
        %124 = sbr.rel (%p121) target = $region24
      $region23: #{tpu_custom_call.1} parent=5 // pred_region
        %s125 = ssub.s32 %s13, 1
        %s126 = sand.u32 %s40, 1
        %s127 = scalar_lea.sflag [#allocation4], %s126
        %s128 = sand.u32 %s40, 1
        %s129 = smul.addr %s128, 8
        %s130 = scalar_lea.vmem [#allocation3], %s129
        // Predicated region
        $region25: #{tpu_custom_call.1} parent=23 // pred_check
          %p131 = pneg %p53
        $region26: #{tpu_custom_call.1} parent=23 // pred_check_branch
          %133 = sbr.rel (%p131) target = $region28
        $region27: #{tpu_custom_call.1} parent=23 // pred_region
          %134 = dma.done %s127, 128
        $region28: #{tpu_custom_call.1} parent=23 // pred_fallthru
          _
        %s135 = sand.u32 %s40, 1
        %s136 = scalar_lea.sflag [#allocation4], %s135
        %s137 = sand.u32 %s40, 1
        %s138 = smul.addr %s137, 8
        %s139 = scalar_lea.vmem [#allocation3], %s138
        %p140 = pneg %p53
        %p141 = pneg %p50
        %p142 = pneg %p81
        %p143 = pneg %p78
        %s144 = sand.u32 %s68, 1
        %s145 = scalar_lea.sflag [#allocation5], %s144
        %s146 = sand.u32 %s68, 1
        %s147 = smul.addr %s146, 8
        %s148 = scalar_lea.vmem [#allocation6], %s147
        %v149 = vld [vmem:[%s130] sm:$0x1]
        %v150 = vlaneseq
        %v151 = vshrl.u32 %v150, 7
        %v152 = vsub.s32 0, %v151
        %v153 = vrot.slane %v149, %v152
        %vm154 = vcmask 254976
        %155 = vst.msk [vmem:[#allocation2 + $0x6] sm:$0x3] %vm154, %v153
        %v156 = vld [vmem:[%s130] sm:$0xff]
        %vm157 = vcmask 261120
        %158 = vst.msk [vmem:[#allocation2 + $0x8] sm:$0xff] %vm157, %v156
        %v159 = vld [vmem:[%s130 + $0x7] sm:$0x1]
        %v160 = vlaneseq
        %v161 = vshrl.u32 %v160, 7
        %v162 = vsub.s32 0, %v161
        %v163 = vrot.slane %v159, %v162
        %164 = vst.msk [vmem:[#allocation2 + $0x10] sm:$0xff] %vm157, %v163
        %v165 = vld [vmem:[#allocation2 + $0x6] sm:$0xff]
        %v166 = vld [vmem:[#allocation2 + $0x7] sm:$0xff]
        %v167 = vadd.f32 %v165, %v166
        %v168 = vld [vmem:[#allocation2 + $0x8] sm:$0xff]
        %v169 = vadd.f32 %v167, %v168
        %v170 = vld [vmem:[#allocation2 + $0x9] sm:$0xff]
        %v171 = vadd.f32 %v169, %v170
        %v172 = vld [vmem:[#allocation2 + $0xa] sm:$0xff]
        %v173 = vadd.f32 %v171, %v172
        %v174 = vmul.f32 %v173, 0.2
        %175 = vst.msk [vmem:[%s148] sm:$0xff] %vm157, %v174
        %s176 = sand.u32 %s68, 1
        %s177 = scalar_lea.sflag [#allocation5], %s176
        %s178 = sand.u32 %s68, 1
        %s179 = smul.addr %s178, 8
        %s180 = scalar_lea.vmem [#allocation6], %s179
        // Predicated region
        $region29: #{tpu_custom_call.1} parent=23 // pred_check
          %p181 = pneg %p78
        $region30: #{tpu_custom_call.1} parent=23 // pred_check_branch
          %183 = sbr.rel (%p181) target = $region32
        $region31: #{tpu_custom_call.1} parent=23 // pred_region
          %s185 = ssub.s32 128, 128
          %186 = vsyncadd %s177, %s185
          %s187 = sadd.s32 %s23, %s22
          %s188 = smul.addr %s187, 128
          %s189 = scalar_lea.hbm %s1, %s188
          %s191 = sshll.u32 %s180, 4
          %s192 = int_to_ptr.vmem [resolvable:$true] %s191
          %194 = dma.vmem_to_hbm [thread:$0]  %s192, 128, %s189, %s177
        $region32: #{tpu_custom_call.1} parent=23 // pred_fallthru
          _
      $region24: #{tpu_custom_call.1} parent=5 // pred_fallthru
        _
      %p195 = scmp.le.s32.totalorder 2, %s13
      // Predicated region
      $region33: #{tpu_custom_call.1} parent=5 // pred_check
        %p196 = pneg %p195
      $region34: #{tpu_custom_call.1} parent=5 // pred_check_branch
        %198 = sbr.rel (%p196) target = $region36
      $region35: #{tpu_custom_call.1} parent=5 // pred_region
        %s199 = ssub.s32 %s13, 2
        // Predicated region
        $region37: #{tpu_custom_call.1} parent=35 // pred_check
          %p200 = pneg %p84
        $region38: #{tpu_custom_call.1} parent=35 // pred_check_branch
          %202 = sbr.rel (%p200) target = $region40
        $region39: #{tpu_custom_call.1} parent=35 // pred_region
          %s203 = sand.u32 %s69, 1
          %s204 = scalar_lea.sflag [#allocation5], %s203
          %s205 = sand.u32 %s69, 1
          %s206 = smul.addr %s205, 8
          %s207 = scalar_lea.vmem [#allocation6], %s206
          %208 = dma.done %s204, 128
        $region40: #{tpu_custom_call.1} parent=35 // pred_fallthru
          _
      $region36: #{tpu_custom_call.1} parent=5 // pred_fallthru
        _
    $region6: #{tpu_custom_call.1} parent=1 // loop_footer
      %s17 = sadd.s32 1, %s13
    $region7: #{tpu_custom_call.1} parent=1 // loop_footer_branch
      %12 = sbr.rel target = $region3
    $region8: #{tpu_custom_call.1} parent=1 // loop_exit
      _
    %209 = vsyncpa [#allocation4], 1
    %s210 = scalar_lea.sflag [#allocation4], 1
    %211 = vsyncpa %s210, 1
    %212 = vsyncpa [#allocation5], 1
    %s213 = scalar_lea.sflag [#allocation5], 1
    %214 = vsyncpa %s213, 1

</llo_original>
